<compile_context>
chip_gen: v7x
topology: tpu7x:2x2x1
jax: 0.10.0
libtpu: 0.0.40
codegen_flags: <defaults>
</compile_context>

<pallas_src>
import math

import jax
import jax.numpy as jnp
from jax.experimental import pallas as pl
from jax.experimental.pallas import tpu as pltpu


# ------------------------------- Pallas kernel -------------------------------

def _layer_scale_kernel(x_ref, g_ref, o_ref):
    # x block and gamma block have identical shapes; compute in f32 and
    # downcast on the store (free on the VPU for this HBM-bound kernel).
    x = x_ref[...].astype(jnp.float32)
    g = g_ref[...].astype(jnp.float32)
    o_ref[...] = (x * g).astype(o_ref.dtype)


# --------------------------------- helpers ------------------------------------

def _round_down(x, m):
    return (x // m) * m


def _round_up(x, m):
    return ((x + m - 1) // m) * m


# --------------------------------- wrapper -----------------------------------

def layer_scale(x, gamma, *,
                target_block_bytes=2 * 1024 * 1024,   # ~2 MiB per x tile
                min_block_bytes=512 * 1024,            # never split below this
                min_grid_steps=8):
    """LayerScale forward: x * gamma, gamma broadcast along the last dim.

    x: (..., D) array.  gamma: (D,) parameter.  Output dtype follows
    result_type(x, gamma) (PyTorch promotion).  The PyTorch `inplace` flag only
    changes aliasing, not the result (donation via input_output_aliases would
    be a purely optional memory-footprint optimization).
    """
    orig_shape = x.shape
    D = orig_shape[-1]
    assert gamma.shape == (D,), (gamma.shape, D)

    out_dtype = jnp.result_type(x.dtype, gamma.dtype)
    gamma_f32 = gamma.astype(jnp.float32)

    xf = x.reshape(-1, D)
    M = xf.shape[0]
    itemsize = jnp.dtype(x.dtype).itemsize
    sub = {4: 8, 2: 16, 1: 32}.get(itemsize, 8)   # sublane multiple per dtype

    # ---- choose a lane-dense view ------------------------------------------
    use_pack = False
    P = 1
    row_align = sub
    if D % 128 != 0 and (M * D) % 128 == 0:
        P = D // math.gcd(D, 128)                      # gamma period (packed rows)
        row_align_p = (P * sub) // math.gcd(P, sub)    # lcm(P, sub)
        # Only pack if the required row alignment alone fits the tile budget.
        if row_align_p * 128 * itemsize <= 2 * target_block_bytes:
            use_pack = True
            row_align = row_align_p

    if use_pack:
        lanes = 128
        R = (M * D) // 128
        xf = xf.reshape(R, lanes)
    else:
        lanes = D
        R = M
        P = 1

    bytes_per_row = lanes * itemsize
    total_bytes = R * bytes_per_row

    # ---- row tile from a byte budget ----------------------------------------
    if total_bytes <= min_block_bytes:
        # Tiny input: a single block (block dims == full array dims).
        tr = R
        grid = (1,)
    else:
        tr_budget = max(row_align,
                        _round_down(target_block_bytes // bytes_per_row, row_align))
        # Prefer >= min_grid_steps blocks (v7x: two TensorCores; also enables
        # read/compute/writeback overlap), but never below min_block_bytes.
        tr_steps = _round_up(pl.cdiv(R, min_grid_steps), row_align)
        tr_floor = max(row_align,
                       _round_down(min_block_bytes // bytes_per_row, row_align))
        tr = min(tr_budget, max(tr_steps, tr_floor))
        grid = (pl.cdiv(R, tr),)

    # ---- gamma, pre-broadcast (f32) to exactly one block --------------------
    # Constant index_map => the tile is fetched into VMEM once for the whole
    # grid; it is never larger than ~one x tile.
    if use_pack:
        reps = (tr * lanes) // D                  # integer: tr % P == 0
        g_tile = jnp.tile(gamma_f32, reps).reshape(tr, lanes)
    else:
        g_tile = jnp.broadcast_to(gamma_f32[None, :], (tr, lanes))

    out = pl.pallas_call(
        _layer_scale_kernel,
        out_shape=jax.ShapeDtypeStruct((R, lanes), out_dtype),
        grid=grid,
        in_specs=[
            pl.BlockSpec((tr, lanes), lambda i: (i, 0)),
            pl.BlockSpec((tr, lanes), lambda i: (0, 0)),   # gamma: fetched once
        ],
        out_specs=pl.BlockSpec((tr, lanes), lambda i: (i, 0)),
        compiler_params=pltpu.CompilerParams(
            dimension_semantics=("parallel",),
            # Headroom for x(2x) + out(2x) + gamma tiles; well under physical
            # VMEM on v5e/v6e (128 MiB) and v7x (64 MiB per TC).
            vmem_limit_bytes=40 * 1024 * 1024,
        ),
    )(xf, g_tile)

    return out.reshape(orig_shape)


# ------------------------------------ main ------------------------------------

if __name__ == "__main__":
    key = jax.random.PRNGKey(0)
    k_x1, k_x2, k_g2, k_x3, k_g3, k_x4, k_g4 = jax.random.split(key, 7)

    fwd = jax.jit(layer_scale)

    # Case 1: module-default init (gamma = init_values * ones(dim)),
    # sub-128 dim -> lane-packed, tiny single block.
    B, N, D = 2, 8, 32
    x1 = jax.random.normal(k_x1, (B, N, D), dtype=jnp.float32)
    gamma1 = 1e-5 * jnp.ones((D,), jnp.float32)
    y1 = jax.block_until_ready(fwd(x1, gamma1))
    assert y1.shape == x1.shape and y1.dtype == x1.dtype
    assert jnp.allclose(y1, x1 * gamma1, rtol=1e-6, atol=1e-7), "case1 mismatch"

    # Case 2: lane-aligned dim (D % 128 == 0) with a "trained" gamma -> direct
    # (M, D) path, tiny single block.
    B2, N2, D2 = 2, 16, 256
    x2 = jax.random.normal(k_x2, (B2, N2, D2), dtype=jnp.float32)
    gamma2 = 1e-5 + 0.01 * jax.random.normal(k_g2, (D2,), dtype=jnp.float32)
    y2 = jax.block_until_ready(fwd(x2, gamma2))
    assert jnp.allclose(y2, x2 * gamma2, rtol=1e-6, atol=1e-7), "case2 mismatch"

    # Case 3: larger row count -> byte-budget tiling, multi-step grid with a
    # masked edge block and a once-fetched gamma tile.
    B3, N3, D3 = 3, 700, 128
    x3 = jax.random.normal(k_x3, (B3, N3, D3), dtype=jnp.float32)
    gamma3 = 1e-5 + 0.01 * jax.random.normal(k_g3, (D3,), dtype=jnp.float32)
    y3 = jax.block_until_ready(fwd(x3, gamma3))
    assert jnp.allclose(y3, x3 * gamma3, rtol=1e-6, atol=1e-7), "case3 mismatch"

    # Case 4: bf16 activations, f32 gamma, D not a multiple of 128 (D=96) ->
    # generalized lane packing + f32 in-kernel multiply + promoted f32 output.
    B4, N4, D4 = 4, 32, 96
    x4 = jax.random.normal(k_x4, (B4, N4, D4), dtype=jnp.float32).astype(jnp.bfloat16)
    gamma4 = 1e-5 + 0.01 * jax.random.normal(k_g4, (D4,), dtype=jnp.float32)
    y4 = jax.block_until_ready(fwd(x4, gamma4))
    assert y4.dtype == jnp.float32
    ref4 = x4.astype(jnp.float32) * gamma4
    assert jnp.allclose(y4, ref4, rtol=1e-6, atol=1e-8), "case4 mismatch"

    print("KERNEL_OK")
</pallas_src>

<mosaic_0001>
module attributes {stable_mosaic.version = 11 : i64} {
  func.func @_layer_scale_kernel(%arg0: i32, %arg1: memref<4x128xf32, #tpu.memory_space<vmem>>, %arg2: memref<4x128xf32, #tpu.memory_space<vmem>>, %arg3: memref<4x128xf32, #tpu.memory_space<vmem>>) attributes {dimension_semantics = [#tpu.dimension_semantics<parallel>], iteration_bounds = array<i64: 1>, scalar_prefetch = 0 : i64, scratch_operands = 0 : i64, tpu.core_type = #tpu.core_type<tc>, window_params = [{transform_indices = @transform_0, window_bounds = array<i64: 4, 128>}, {pipeline_mode = #tpu.pipeline_mode<synchronous>, transform_indices = @transform_1, window_bounds = array<i64: 4, 128>}, {transform_indices = @transform_2, window_bounds = array<i64: 4, 128>}]} {
    %c0 = arith.constant 0 : index
    %c0_0 = arith.constant 0 : index
    %0 = vector.load %arg1[%c0, %c0_0] : memref<4x128xf32, #tpu.memory_space<vmem>>, vector<4x128xf32>
    %c0_1 = arith.constant 0 : index
    %c0_2 = arith.constant 0 : index
    %1 = vector.load %arg2[%c0_1, %c0_2] : memref<4x128xf32, #tpu.memory_space<vmem>>, vector<4x128xf32>
    %2 = arith.mulf %0, %1 : vector<4x128xf32>
    %c0_3 = arith.constant 0 : index
    %c0_4 = arith.constant 0 : index
    %3 = vector.load %arg3[%c0_3, %c0_4] : memref<4x128xf32, #tpu.memory_space<vmem>>, vector<4x128xf32>
    tpu.vector_store %arg3[%c0_3, %c0_4], %2 {strides = array<i32>} : memref<4x128xf32, #tpu.memory_space<vmem>>, vector<4x128xf32>,
    return
  }
  func.func @transform_0(%arg0: i32) -> (i32, i32) {
    %c0_i32 = arith.constant 0 : i32
    %c0_i32_0 = arith.constant 0 : i32
    return %arg0, %c0_i32 : i32, i32
  }
  func.func @transform_1(%arg0: i32) -> (i32, i32) {
    %c0_i32 = arith.constant 0 : i32
    %c0_i32_0 = arith.constant 0 : i32
    %c0_i32_1 = arith.constant 0 : i32
    return %c0_i32, %c0_i32_0 : i32, i32
  }
  func.func @transform_2(%arg0: i32) -> (i32, i32) {
    %c0_i32 = arith.constant 0 : i32
    %c0_i32_0 = arith.constant 0 : i32
    return %arg0, %c0_i32 : i32, i32
  }
}

</mosaic_0001>

<llo_original>
// kernel: layer_scale.1
$region0: #{layer_scale.1}
  #allocation0 [shape = 'u32[]', space=smem, size = 0x4, offset = 0x4, fixed_abs, tag = 'smem constant byte address 0x4 - core index']
  #allocation1 [shape = 'u32[144,128]{1,0:T(1,128)}', space=vmem, size = 0x12000, scoped, tag = 'internal scratch']
  %s0 = inlined_call_operand.vmem [shape: f32[4,128], index: 0, kind: input, shape index: {}]
  %s1 = inlined_call_operand.vmem [shape: f32[4,128], index: 1, kind: input, shape index: {}]
  %s2 = inlined_call_operand.vmem [shape: f32[4,128], index: 2, kind: output, shape index: {}]
  %s3 = sld [smem:[#allocation0]]
  $region18: #{layer_scale.1} parent=0
    _
  %s5 = ssub.s32 1, %s3
  %s6 = scalar_select 0, %s5, %s3
  // Predicated region
  $region2: #{layer_scale.1} parent=0 // pred_check
    _
  $region3: #{layer_scale.1} parent=0 // pred_check_branch
    %8 = sbr.rel (0) target = $region5
  $region4: #{layer_scale.1} parent=0 // pred_region
    _
  $region5: #{layer_scale.1} parent=0 // pred_fallthru
    _
  // Predicated region
  $region6: #{layer_scale.1} parent=0 // pred_check
    _
  $region7: #{layer_scale.1} parent=0 // pred_check_branch
    %10 = sbr.rel (0) target = $region9
  $region8: #{layer_scale.1} parent=0 // pred_region
    _
  $region9: #{layer_scale.1} parent=0 // pred_fallthru
    _
  %v11 = vld [vmem:[%s0] sm:$0xf]
  %v12 = vld [vmem:[%s1] sm:$0xf]
  %v13 = vmul.f32 %v11, %v12
  %14 = vst [vmem:[%s2] sm:$0xf] %v13
  // Predicated region
  $region10: #{layer_scale.1} parent=0 // pred_check
    _
  $region11: #{layer_scale.1} parent=0 // pred_check_branch
    %16 = sbr.rel (0) target = $region13
  $region12: #{layer_scale.1} parent=0 // pred_region
    _
  $region13: #{layer_scale.1} parent=0 // pred_fallthru
    _
  // Predicated region
  $region14: #{layer_scale.1} parent=0 // pred_check
    _
  $region15: #{layer_scale.1} parent=0 // pred_check_branch
    %18 = sbr.rel (0) target = $region17
  $region16: #{layer_scale.1} parent=0 // pred_region
    _
  $region17: #{layer_scale.1} parent=0 // pred_fallthru
    _

</llo_original>
